<compile_context>
chip_gen: v7x
topology: tpu7x:2x2x1
jax: 0.10.0
libtpu: 0.0.40
codegen_flags: <defaults>
</compile_context>

<pallas_src>
import functools

import jax
import jax.numpy as jnp
import numpy as np
from jax.experimental import pallas as pl
from jax.experimental.pallas import tpu as pltpu


# ----------------------------------------------------------------------------- kernel
def _fused_net_kernel(n_enc, n_dec, poly_order, latent_dim, *refs):
    """One fused kernel: encoder (primal+JVP) -> SINDy library + E -> decoder (primal+JVP).

    Ref order: x, dx, [enc w,b]*n_enc, W_E_nonconst, b_E_eff, [dec w,b]*n_dec,
               z, dz, dzb, xb, dxb.
    """
    idx = 0
    x_ref, dx_ref = refs[idx], refs[idx + 1]
    idx += 2
    enc = [(refs[idx + 2 * i], refs[idx + 2 * i + 1]) for i in range(n_enc)]
    idx += 2 * n_enc
    we_ref, be_ref = refs[idx], refs[idx + 1]
    idx += 2
    dec = [(refs[idx + 2 * i], refs[idx + 2 * i + 1]) for i in range(n_dec)]
    idx += 2 * n_dec
    z_ref, dz_ref, dzb_ref, xb_ref, dxb_ref = refs[idx:idx + 5]

    def mlp_with_jvp(h, t, layers, n_layers):
        # Primal y = act(h @ W + b), tangent t_out = act'(pre) * (t @ W).
        for li, (w_ref, b_ref) in enumerate(layers):
            w = w_ref[...]
            pre = jnp.dot(h, w, preferred_element_type=jnp.float32) + b_ref[...]
            tp = jnp.dot(t, w, preferred_element_type=jnp.float32)
            if li < n_layers - 1:
                s = jax.nn.sigmoid(pre)          # exp -> EUP; derivative mul -> VALU
                h = s
                t = s * (1.0 - s) * tp
            else:                                # Identity activation on the last layer
                h, t = pre, tp
        return h, t

    # ---- encoder: primal on x, tangent on dx
    z, dz = mlp_with_jvp(x_ref[...], dx_ref[...], enc, n_enc)
    z_ref[...] = z
    dz_ref[...] = dz

    # ---- SINDy library (non-constant columns only; ones are folded into b_E_eff).
    # Built entirely in registers: row-wise vectorized products + one concatenate.
    cols = [z]                                   # degree-1 block
    if poly_order > 1:
        for i in range(latent_dim):              # z_i * z_j for j >= i (lane-vectorized)
            cols.append(z[:, i:i + 1] * z[:, i:])
    if poly_order > 2:
        for i in range(latent_dim):
            for j in range(i, latent_dim):
                cols.append(z[:, i:i + 1] * z[:, j:j + 1] * z[:, j:])
    if poly_order > 3:
        for i in range(latent_dim):
            for j in range(i, latent_dim):
                for k in range(j, latent_dim):
                    cols.append(z[:, i:i + 1] * z[:, j:j + 1] * z[:, k:k + 1] * z[:, k:])
    theta_nc = jnp.concatenate(cols, axis=1) if len(cols) > 1 else cols[0]

    dzb = jnp.dot(theta_nc, we_ref[...], preferred_element_type=jnp.float32) + be_ref[...]
    dzb_ref[...] = dzb

    # ---- decoder: primal on z, tangent on dzb
    xb, dxb = mlp_with_jvp(z, dzb, dec, n_dec)
    xb_ref[...] = xb
    dxb_ref[...] = dxb


# ----------------------------------------------------------------------------- wrapper
def _pick_block_n(n):
    if n <= 1024:
        return n
    for bn in (1024, 512, 256, 128, 64, 32, 16, 8):
        if n % bn == 0:
            return bn
    return n


def net_forward(params, x, dx, poly_order):
    assert poly_order >= 1, "kernel path assumes at least the linear library block"
    n, d_in = x.shape
    enc = params["encoder"]
    dec = params["decoder"]
    latent_dim = enc[-1][0].shape[1]
    d_out = dec[-1][0].shape[1]

    # Fold the constant-ones library columns into an effective bias (valid for any W_E).
    e_w = params["E_w"]
    e_b = params["E_b"]
    w_e_nc = e_w[latent_dim:, :]                                    # (sindy_dim-L, L)
    b_e_eff = (e_b + jnp.sum(e_w[:latent_dim, :], axis=0)).reshape(1, latent_dim)

    bn = _pick_block_n(n)
    assert n % bn == 0
    grid = (n // bn,)

    def row_spec(cols):
        return pl.BlockSpec((bn, cols), lambda i: (i, 0))

    def full_spec(shape):
        return pl.BlockSpec(shape, lambda i: (0, 0))

    operands = [x, dx]
    in_specs = [row_spec(d_in), row_spec(d_in)]
    for w, b in enc:
        operands += [w, b.reshape(1, -1)]
        in_specs += [full_spec(w.shape), full_spec((1, b.shape[0]))]
    operands += [w_e_nc, b_e_eff]
    in_specs += [full_spec(w_e_nc.shape), full_spec(b_e_eff.shape)]
    for w, b in dec:
        operands += [w, b.reshape(1, -1)]
        in_specs += [full_spec(w.shape), full_spec((1, b.shape[0]))]

    out_shape = (
        jax.ShapeDtypeStruct((n, latent_dim), jnp.float32),   # z
        jax.ShapeDtypeStruct((n, latent_dim), jnp.float32),   # dz
        jax.ShapeDtypeStruct((n, latent_dim), jnp.float32),   # dzb
        jax.ShapeDtypeStruct((n, d_out), jnp.float32),        # xb
        jax.ShapeDtypeStruct((n, d_out), jnp.float32),        # dxb
    )
    out_specs = (
        row_spec(latent_dim), row_spec(latent_dim), row_spec(latent_dim),
        row_spec(d_out), row_spec(d_out),
    )

    kernel = functools.partial(_fused_net_kernel, len(enc), len(dec), poly_order, latent_dim)
    return pl.pallas_call(
        kernel,
        grid=grid,
        in_specs=in_specs,
        out_specs=out_specs,
        out_shape=out_shape,
        compiler_params=pltpu.CompilerParams(dimension_semantics=("parallel",)),
    )(*operands)


# ----------------------------------------------------------------------------- reference
_HI = jax.lax.Precision.HIGHEST


def _mlp_fwd(layers, x):
    h = x
    for li, (w, b) in enumerate(layers):
        h = jnp.dot(h, w, precision=_HI) + b
        if li < len(layers) - 1:
            h = jax.nn.sigmoid(h)
    return h


def _sindy_library_ref(z, poly_order, latent_dim):
    n = z.shape[0]
    cols = [jnp.ones((n,), jnp.float32) for _ in range(latent_dim)]
    if poly_order > 0:
        for i in range(latent_dim):
            cols.append(z[:, i])
    if poly_order > 1:
        for i in range(latent_dim):
            for j in range(i, latent_dim):
                cols.append(z[:, i] * z[:, j])
    if poly_order > 2:
        for i in range(latent_dim):
            for j in range(i, latent_dim):
                for k in range(j, latent_dim):
                    cols.append(z[:, i] * z[:, j] * z[:, k])
    if poly_order > 3:
        for i in range(latent_dim):
            for j in range(i, latent_dim):
                for k in range(j, latent_dim):
                    for p in range(k, latent_dim):
                        cols.append(z[:, i] * z[:, j] * z[:, k] * z[:, p])
    return jnp.stack(cols, axis=1)


def net_forward_ref(params, x, dx, poly_order, latent_dim):
    z, dz = jax.jvp(lambda xx: _mlp_fwd(params["encoder"], xx), (x,), (dx,))
    theta = _sindy_library_ref(z, poly_order, latent_dim)
    dzb = jnp.dot(theta, params["E_w"], precision=_HI) + params["E_b"]
    xb, dxb = jax.jvp(lambda zz: _mlp_fwd(params["decoder"], zz), (z,), (dzb,))
    return z, dz, dzb, xb, dxb


# ----------------------------------------------------------------------------- params
def _xavier_linear(key, fan_in, fan_out):
    kw, kb = jax.random.split(key)
    bound_w = float(np.sqrt(6.0 / (fan_in + fan_out)))  # gain('sigmoid') == 1
    w = jax.random.uniform(kw, (fan_in, fan_out), jnp.float32, -bound_w, bound_w)
    bound_b = 1.0 / float(np.sqrt(fan_in))
    b = jax.random.uniform(kb, (fan_out,), jnp.float32, -bound_b, bound_b)
    return w, b


def make_params(key, widths, sindy_dim, latent_dim):
    keys = jax.random.split(key, 2 * (len(widths) - 1) + 1)
    encoder, decoder = [], []
    for i in range(len(widths) - 1):
        encoder.append(_xavier_linear(keys[2 * i], widths[i], widths[i + 1]))
        decoder.append(_xavier_linear(keys[2 * i + 1], widths[-i - 1], widths[-i - 2]))
    e_w = jnp.ones((sindy_dim, latent_dim), jnp.float32)  # nn.init.ones_(E.weight)
    bound = 1.0 / float(np.sqrt(sindy_dim))
    e_b = jax.random.uniform(keys[-1], (latent_dim,), jnp.float32, -bound, bound)
    return {"encoder": encoder, "decoder": decoder, "E_w": e_w, "E_b": e_b}


# ----------------------------------------------------------------------------- main
if __name__ == "__main__":
    # model config (model_order == 1 path)
    batch_n = 8
    input_dim = 16
    latent_dim = 4
    widths = [input_dim, 32, latent_dim]
    poly_order = 2
    sindy_dim = latent_dim + latent_dim + (latent_dim * (latent_dim + 1)) // 2  # 18

    key = jax.random.PRNGKey(0)
    kp, kx, kdx = jax.random.split(key, 3)
    params = make_params(kp, widths, sindy_dim, latent_dim)
    x = jax.random.normal(kx, (batch_n, input_dim), jnp.float32)
    dx = jax.random.normal(kdx, (batch_n, input_dim), jnp.float32)

    fwd = jax.jit(functools.partial(net_forward, poly_order=poly_order))
    outs = jax.block_until_ready(fwd(params, x, dx))

    refs = jax.block_until_ready(
        net_forward_ref(params, x, dx, poly_order, latent_dim))

    # The kernel uses the MXU's default (single bf16-pass) precision per the perf review,
    # while the reference uses f32 HIGHEST; compare with a tolerance scaled to each
    # output's magnitude (bf16 operand rounding compounded through the stacked matmuls).
    for name, o, r in zip(("z", "dz", "dzb", "xb", "dxb"), outs, refs):
        o = np.asarray(o)
        r = np.asarray(r)
        scale = max(1.0, float(np.max(np.abs(r))))
        err = float(np.max(np.abs(o - r)))
        assert err <= 2e-2 * scale, f"mismatch in {name}: max_err={err}, scale={scale}"

    print("KERNEL_OK")
</pallas_src>

<mosaic_0001>
module attributes {stable_mosaic.version = 11 : i64} {
  func.func @_fused_net_kernel(%arg0: i32, %arg1: memref<8x16xf32, #tpu.memory_space<vmem>>, %arg2: memref<8x16xf32, #tpu.memory_space<vmem>>, %arg3: memref<16x32xf32, #tpu.memory_space<vmem>>, %arg4: memref<1x32xf32, #tpu.memory_space<vmem>>, %arg5: memref<32x4xf32, #tpu.memory_space<vmem>>, %arg6: memref<1x4xf32, #tpu.memory_space<vmem>>, %arg7: memref<14x4xf32, #tpu.memory_space<vmem>>, %arg8: memref<1x4xf32, #tpu.memory_space<vmem>>, %arg9: memref<4x32xf32, #tpu.memory_space<vmem>>, %arg10: memref<1x32xf32, #tpu.memory_space<vmem>>, %arg11: memref<32x16xf32, #tpu.memory_space<vmem>>, %arg12: memref<1x16xf32, #tpu.memory_space<vmem>>, %arg13: memref<8x4xf32, #tpu.memory_space<vmem>>, %arg14: memref<8x4xf32, #tpu.memory_space<vmem>>, %arg15: memref<8x4xf32, #tpu.memory_space<vmem>>, %arg16: memref<8x16xf32, #tpu.memory_space<vmem>>, %arg17: memref<8x16xf32, #tpu.memory_space<vmem>>) attributes {dimension_semantics = [#tpu.dimension_semantics<parallel>], iteration_bounds = array<i64: 1>, scalar_prefetch = 0 : i64, scratch_operands = 0 : i64, tpu.core_type = #tpu.core_type<tc>, window_params = [{transform_indices = @transform_0, window_bounds = array<i64: 8, 16>}, {transform_indices = @transform_1, window_bounds = array<i64: 8, 16>}, {pipeline_mode = #tpu.pipeline_mode<synchronous>, transform_indices = @transform_2, window_bounds = array<i64: 16, 32>}, {pipeline_mode = #tpu.pipeline_mode<synchronous>, transform_indices = @transform_3, window_bounds = array<i64: 1, 32>}, {pipeline_mode = #tpu.pipeline_mode<synchronous>, transform_indices = @transform_4, window_bounds = array<i64: 32, 4>}, {pipeline_mode = #tpu.pipeline_mode<synchronous>, transform_indices = @transform_5, window_bounds = array<i64: 1, 4>}, {pipeline_mode = #tpu.pipeline_mode<synchronous>, transform_indices = @transform_6, window_bounds = array<i64: 14, 4>}, {pipeline_mode = #tpu.pipeline_mode<synchronous>, transform_indices = @transform_7, window_bounds = array<i64: 1, 4>}, {pipeline_mode = #tpu.pipeline_mode<synchronous>, transform_indices = @transform_8, window_bounds = array<i64: 4, 32>}, {pipeline_mode = #tpu.pipeline_mode<synchronous>, transform_indices = @transform_9, window_bounds = array<i64: 1, 32>}, {pipeline_mode = #tpu.pipeline_mode<synchronous>, transform_indices = @transform_10, window_bounds = array<i64: 32, 16>}, {pipeline_mode = #tpu.pipeline_mode<synchronous>, transform_indices = @transform_11, window_bounds = array<i64: 1, 16>}, {transform_indices = @transform_12, window_bounds = array<i64: 8, 4>}, {transform_indices = @transform_13, window_bounds = array<i64: 8, 4>}, {transform_indices = @transform_14, window_bounds = array<i64: 8, 4>}, {transform_indices = @transform_15, window_bounds = array<i64: 8, 16>}, {transform_indices = @transform_16, window_bounds = array<i64: 8, 16>}]} {
    %c0 = arith.constant 0 : index
    %c0_0 = arith.constant 0 : index
    %0 = vector.load %arg1[%c0, %c0_0] : memref<8x16xf32, #tpu.memory_space<vmem>>, vector<8x16xf32>
    %c0_1 = arith.constant 0 : index
    %c0_2 = arith.constant 0 : index
    %1 = vector.load %arg2[%c0_1, %c0_2] : memref<8x16xf32, #tpu.memory_space<vmem>>, vector<8x16xf32>
    %c0_3 = arith.constant 0 : index
    %c0_4 = arith.constant 0 : index
    %2 = vector.load %arg3[%c0_3, %c0_4] : memref<16x32xf32, #tpu.memory_space<vmem>>, vector<16x32xf32>
    %cst = arith.constant dense<0.000000e+00> : vector<8x32xf32>
    %3 = tpu.matmul %0, %2, %cst {dimension_numbers = #tpu.dot_dimension_numbers<[1], [0], [0], [1], [0, 0, 1, 1], [], []>} : vector<8x16xf32>, vector<16x32xf32>, vector<8x32xf32> -> vector<8x32xf32>
    %c0_5 = arith.constant 0 : index
    %c0_6 = arith.constant 0 : index
    %4 = vector.load %arg4[%c0_5, %c0_6] : memref<1x32xf32, #tpu.memory_space<vmem>>, vector<1x32xf32>
    %5 = vector.broadcast %4 : vector<1x32xf32> to vector<8x32xf32>
    %6 = arith.addf %3, %5 : vector<8x32xf32>
    %cst_7 = arith.constant dense<0.000000e+00> : vector<8x32xf32>
    %7 = tpu.matmul %1, %2, %cst_7 {dimension_numbers = #tpu.dot_dimension_numbers<[1], [0], [0], [1], [0, 0, 1, 1], [], []>} : vector<8x16xf32>, vector<16x32xf32>, vector<8x32xf32> -> vector<8x32xf32>
    %8 = arith.negf %6 : vector<8x32xf32>
    %9 = math.exp %8 : vector<8x32xf32>
    %cst_8 = arith.constant 1.000000e+00 : f32
    %10 = vector.broadcast %cst_8 : f32 to vector<8x32xf32>
    %11 = arith.addf %10, %9 : vector<8x32xf32>
    %12 = arith.divf %10, %11 : vector<8x32xf32>
    %cst_9 = arith.constant 1.000000e+00 : f32
    %13 = vector.broadcast %cst_9 : f32 to vector<8x32xf32>
    %14 = arith.subf %13, %12 : vector<8x32xf32>
    %15 = arith.mulf %12, %14 : vector<8x32xf32>
    %16 = arith.mulf %15, %7 : vector<8x32xf32>
    %c0_10 = arith.constant 0 : index
    %c0_11 = arith.constant 0 : index
    %17 = vector.load %arg5[%c0_10, %c0_11] : memref<32x4xf32, #tpu.memory_space<vmem>>, vector<32x4xf32>
    %cst_12 = arith.constant dense<0.000000e+00> : vector<8x4xf32>
    %18 = tpu.matmul %12, %17, %cst_12 {dimension_numbers = #tpu.dot_dimension_numbers<[1], [0], [0], [1], [0, 0, 1, 1], [], []>} : vector<8x32xf32>, vector<32x4xf32>, vector<8x4xf32> -> vector<8x4xf32>
    %c0_13 = arith.constant 0 : index
    %c0_14 = arith.constant 0 : index
    %19 = vector.load %arg6[%c0_13, %c0_14] : memref<1x4xf32, #tpu.memory_space<vmem>>, vector<1x4xf32>
    %20 = vector.broadcast %19 : vector<1x4xf32> to vector<8x4xf32>
    %21 = arith.addf %18, %20 : vector<8x4xf32>
    %cst_15 = arith.constant dense<0.000000e+00> : vector<8x4xf32>
    %22 = tpu.matmul %16, %17, %cst_15 {dimension_numbers = #tpu.dot_dimension_numbers<[1], [0], [0], [1], [0, 0, 1, 1], [], []>} : vector<8x32xf32>, vector<32x4xf32>, vector<8x4xf32> -> vector<8x4xf32>
    %c0_16 = arith.constant 0 : index
    %c0_17 = arith.constant 0 : index
    %23 = vector.load %arg13[%c0_16, %c0_17] : memref<8x4xf32, #tpu.memory_space<vmem>>, vector<8x4xf32>
    tpu.vector_store %arg13[%c0_16, %c0_17], %21 {strides = array<i32>} : memref<8x4xf32, #tpu.memory_space<vmem>>, vector<8x4xf32>,
    %c0_18 = arith.constant 0 : index
    %c0_19 = arith.constant 0 : index
    %24 = vector.load %arg14[%c0_18, %c0_19] : memref<8x4xf32, #tpu.memory_space<vmem>>, vector<8x4xf32>
    tpu.vector_store %arg14[%c0_18, %c0_19], %22 {strides = array<i32>} : memref<8x4xf32, #tpu.memory_space<vmem>>, vector<8x4xf32>,
    %25 = vector.extract_strided_slice %21 {offsets = [0, 0], sizes = [8, 1], strides = [1, 1]} : vector<8x4xf32> to vector<8x1xf32>
    %26 = vector.broadcast %25 : vector<8x1xf32> to vector<8x4xf32>
    %27 = arith.mulf %26, %21 : vector<8x4xf32>
    %28 = vector.extract_strided_slice %21 {offsets = [0, 1], sizes = [8, 1], strides = [1, 1]} : vector<8x4xf32> to vector<8x1xf32>
    %29 = vector.extract_strided_slice %21 {offsets = [0, 1], sizes = [8, 3], strides = [1, 1]} : vector<8x4xf32> to vector<8x3xf32>
    %30 = vector.broadcast %28 : vector<8x1xf32> to vector<8x3xf32>
    %31 = arith.mulf %30, %29 : vector<8x3xf32>
    %32 = vector.extract_strided_slice %21 {offsets = [0, 2], sizes = [8, 1], strides = [1, 1]} : vector<8x4xf32> to vector<8x1xf32>
    %33 = vector.extract_strided_slice %21 {offsets = [0, 2], sizes = [8, 2], strides = [1, 1]} : vector<8x4xf32> to vector<8x2xf32>
    %34 = vector.broadcast %32 : vector<8x1xf32> to vector<8x2xf32>
    %35 = arith.mulf %34, %33 : vector<8x2xf32>
    %36 = vector.extract_strided_slice %21 {offsets = [0, 3], sizes = [8, 1], strides = [1, 1]} : vector<8x4xf32> to vector<8x1xf32>
    %37 = vector.extract_strided_slice %21 {offsets = [0, 3], sizes = [8, 1], strides = [1, 1]} : vector<8x4xf32> to vector<8x1xf32>
    %38 = arith.mulf %36, %37 : vector<8x1xf32>
    %39 = tpu.concatenate %21, %27, %31, %35, %38 in 1 : vector<8x4xf32>, vector<8x4xf32>, vector<8x3xf32>, vector<8x2xf32>, vector<8x1xf32> -> vector<8x14xf32>
    %c0_20 = arith.constant 0 : index
    %c0_21 = arith.constant 0 : index
    %40 = vector.load %arg7[%c0_20, %c0_21] : memref<14x4xf32, #tpu.memory_space<vmem>>, vector<14x4xf32>
    %cst_22 = arith.constant dense<0.000000e+00> : vector<8x4xf32>
    %41 = tpu.matmul %39, %40, %cst_22 {dimension_numbers = #tpu.dot_dimension_numbers<[1], [0], [0], [1], [0, 0, 1, 1], [], []>} : vector<8x14xf32>, vector<14x4xf32>, vector<8x4xf32> -> vector<8x4xf32>
    %c0_23 = arith.constant 0 : index
    %c0_24 = arith.constant 0 : index
    %42 = vector.load %arg8[%c0_23, %c0_24] : memref<1x4xf32, #tpu.memory_space<vmem>>, vector<1x4xf32>
    %43 = vector.broadcast %42 : vector<1x4xf32> to vector<8x4xf32>
    %44 = arith.addf %41, %43 : vector<8x4xf32>
    %c0_25 = arith.constant 0 : index
    %c0_26 = arith.constant 0 : index
    %45 = vector.load %arg15[%c0_25, %c0_26] : memref<8x4xf32, #tpu.memory_space<vmem>>, vector<8x4xf32>
    tpu.vector_store %arg15[%c0_25, %c0_26], %44 {strides = array<i32>} : memref<8x4xf32, #tpu.memory_space<vmem>>, vector<8x4xf32>,
    %c0_27 = arith.constant 0 : index
    %c0_28 = arith.constant 0 : index
    %46 = vector.load %arg9[%c0_27, %c0_28] : memref<4x32xf32, #tpu.memory_space<vmem>>, vector<4x32xf32>
    %cst_29 = arith.constant dense<0.000000e+00> : vector<8x32xf32>
    %47 = tpu.matmul %21, %46, %cst_29 {dimension_numbers = #tpu.dot_dimension_numbers<[1], [0], [0], [1], [0, 0, 1, 1], [], []>} : vector<8x4xf32>, vector<4x32xf32>, vector<8x32xf32> -> vector<8x32xf32>
    %c0_30 = arith.constant 0 : index
    %c0_31 = arith.constant 0 : index
    %48 = vector.load %arg10[%c0_30, %c0_31] : memref<1x32xf32, #tpu.memory_space<vmem>>, vector<1x32xf32>
    %49 = vector.broadcast %48 : vector<1x32xf32> to vector<8x32xf32>
    %50 = arith.addf %47, %49 : vector<8x32xf32>
    %cst_32 = arith.constant dense<0.000000e+00> : vector<8x32xf32>
    %51 = tpu.matmul %44, %46, %cst_32 {dimension_numbers = #tpu.dot_dimension_numbers<[1], [0], [0], [1], [0, 0, 1, 1], [], []>} : vector<8x4xf32>, vector<4x32xf32>, vector<8x32xf32> -> vector<8x32xf32>
    %52 = arith.negf %50 : vector<8x32xf32>
    %53 = math.exp %52 : vector<8x32xf32>
    %cst_33 = arith.constant 1.000000e+00 : f32
    %54 = vector.broadcast %cst_33 : f32 to vector<8x32xf32>
    %55 = arith.addf %54, %53 : vector<8x32xf32>
    %56 = arith.divf %54, %55 : vector<8x32xf32>
    %cst_34 = arith.constant 1.000000e+00 : f32
    %57 = vector.broadcast %cst_34 : f32 to vector<8x32xf32>
    %58 = arith.subf %57, %56 : vector<8x32xf32>
    %59 = arith.mulf %56, %58 : vector<8x32xf32>
    %60 = arith.mulf %59, %51 : vector<8x32xf32>
    %c0_35 = arith.constant 0 : index
    %c0_36 = arith.constant 0 : index
    %61 = vector.load %arg11[%c0_35, %c0_36] : memref<32x16xf32, #tpu.memory_space<vmem>>, vector<32x16xf32>
    %cst_37 = arith.constant dense<0.000000e+00> : vector<8x16xf32>
    %62 = tpu.matmul %56, %61, %cst_37 {dimension_numbers = #tpu.dot_dimension_numbers<[1], [0], [0], [1], [0, 0, 1, 1], [], []>} : vector<8x32xf32>, vector<32x16xf32>, vector<8x16xf32> -> vector<8x16xf32>
    %c0_38 = arith.constant 0 : index
    %c0_39 = arith.constant 0 : index
    %63 = vector.load %arg12[%c0_38, %c0_39] : memref<1x16xf32, #tpu.memory_space<vmem>>, vector<1x16xf32>
    %64 = vector.broadcast %63 : vector<1x16xf32> to vector<8x16xf32>
    %65 = arith.addf %62, %64 : vector<8x16xf32>
    %cst_40 = arith.constant dense<0.000000e+00> : vector<8x16xf32>
    %66 = tpu.matmul %60, %61, %cst_40 {dimension_numbers = #tpu.dot_dimension_numbers<[1], [0], [0], [1], [0, 0, 1, 1], [], []>} : vector<8x32xf32>, vector<32x16xf32>, vector<8x16xf32> -> vector<8x16xf32>
    %c0_41 = arith.constant 0 : index
    %c0_42 = arith.constant 0 : index
    %67 = vector.load %arg16[%c0_41, %c0_42] : memref<8x16xf32, #tpu.memory_space<vmem>>, vector<8x16xf32>
    tpu.vector_store %arg16[%c0_41, %c0_42], %65 {strides = array<i32>} : memref<8x16xf32, #tpu.memory_space<vmem>>, vector<8x16xf32>,
    %c0_43 = arith.constant 0 : index
    %c0_44 = arith.constant 0 : index
    %68 = vector.load %arg17[%c0_43, %c0_44] : memref<8x16xf32, #tpu.memory_space<vmem>>, vector<8x16xf32>
    tpu.vector_store %arg17[%c0_43, %c0_44], %66 {strides = array<i32>} : memref<8x16xf32, #tpu.memory_space<vmem>>, vector<8x16xf32>,
    return
  }
  func.func @transform_0(%arg0: i32) -> (i32, i32) {
    %c0_i32 = arith.constant 0 : i32
    %c0_i32_0 = arith.constant 0 : i32
    return %arg0, %c0_i32 : i32, i32
  }
  func.func @transform_1(%arg0: i32) -> (i32, i32) {
    %c0_i32 = arith.constant 0 : i32
    %c0_i32_0 = arith.constant 0 : i32
    return %arg0, %c0_i32 : i32, i32
  }
  func.func @transform_2(%arg0: i32) -> (i32, i32) {
    %c0_i32 = arith.constant 0 : i32
    %c0_i32_0 = arith.constant 0 : i32
    %c0_i32_1 = arith.constant 0 : i32
    return %c0_i32, %c0_i32_0 : i32, i32
  }
  func.func @transform_3(%arg0: i32) -> (i32, i32) {
    %c0_i32 = arith.constant 0 : i32
    %c0_i32_0 = arith.constant 0 : i32
    %c0_i32_1 = arith.constant 0 : i32
    return %c0_i32, %c0_i32_0 : i32, i32
  }
  func.func @transform_4(%arg0: i32) -> (i32, i32) {
    %c0_i32 = arith.constant 0 : i32
    %c0_i32_0 = arith.constant 0 : i32
    %c0_i32_1 = arith.constant 0 : i32
    return %c0_i32, %c0_i32_0 : i32, i32
  }
  func.func @transform_5(%arg0: i32) -> (i32, i32) {
    %c0_i32 = arith.constant 0 : i32
    %c0_i32_0 = arith.constant 0 : i32
    %c0_i32_1 = arith.constant 0 : i32
    return %c0_i32, %c0_i32_0 : i32, i32
  }
  func.func @transform_6(%arg0: i32) -> (i32, i32) {
    %c0_i32 = arith.constant 0 : i32
    %c0_i32_0 = arith.constant 0 : i32
    %c0_i32_1 = arith.constant 0 : i32
    return %c0_i32, %c0_i32_0 : i32, i32
  }
  func.func @transform_7(%arg0: i32) -> (i32, i32) {
    %c0_i32 = arith.constant 0 : i32
    %c0_i32_0 = arith.constant 0 : i32
    %c0_i32_1 = arith.constant 0 : i32
    return %c0_i32, %c0_i32_0 : i32, i32
  }
  func.func @transform_8(%arg0: i32) -> (i32, i32) {
    %c0_i32 = arith.constant 0 : i32
    %c0_i32_0 = arith.constant 0 : i32
    %c0_i32_1 = arith.constant 0 : i32
    return %c0_i32, %c0_i32_0 : i32, i32
  }
  func.func @transform_9(%arg0: i32) -> (i32, i32) {
    %c0_i32 = arith.constant 0 : i32
    %c0_i32_0 = arith.constant 0 : i32
    %c0_i32_1 = arith.constant 0 : i32
    return %c0_i32, %c0_i32_0 : i32, i32
  }
  func.func @transform_10(%arg0: i32) -> (i32, i32) {
    %c0_i32 = arith.constant 0 : i32
    %c0_i32_0 = arith.constant 0 : i32
    %c0_i32_1 = arith.constant 0 : i32
    return %c0_i32, %c0_i32_0 : i32, i32
  }
  func.func @transform_11(%arg0: i32) -> (i32, i32) {
    %c0_i32 = arith.constant 0 : i32
    %c0_i32_0 = arith.constant 0 : i32
    %c0_i32_1 = arith.constant 0 : i32
    return %c0_i32, %c0_i32_0 : i32, i32
  }
  func.func @transform_12(%arg0: i32) -> (i32, i32) {
    %c0_i32 = arith.constant 0 : i32
    %c0_i32_0 = arith.constant 0 : i32
    return %arg0, %c0_i32 : i32, i32
  }
  func.func @transform_13(%arg0: i32) -> (i32, i32) {
    %c0_i32 = arith.constant 0 : i32
    %c0_i32_0 = arith.constant 0 : i32
    return %arg0, %c0_i32 : i32, i32
  }
  func.func @transform_14(%arg0: i32) -> (i32, i32) {
    %c0_i32 = arith.constant 0 : i32
    %c0_i32_0 = arith.constant 0 : i32
    return %arg0, %c0_i32 : i32, i32
  }
  func.func @transform_15(%arg0: i32) -> (i32, i32) {
    %c0_i32 = arith.constant 0 : i32
    %c0_i32_0 = arith.constant 0 : i32
    return %arg0, %c0_i32 : i32, i32
  }
  func.func @transform_16(%arg0: i32) -> (i32, i32) {
    %c0_i32 = arith.constant 0 : i32
    %c0_i32_0 = arith.constant 0 : i32
    return %arg0, %c0_i32 : i32, i32
  }
}

</mosaic_0001>

<llo_original>
// kernel: net_forward.1
$region0: #{net_forward.1}
  #allocation0 [shape = 'u32[]', space=smem, size = 0x4, offset = 0x4, fixed_abs, tag = 'smem constant byte address 0x4 - core index']
  #allocation1 [shape = 'u32[144,128]{1,0:T(1,128)}', space=vmem, size = 0x12000, scoped, tag = 'internal scratch']
  %s0 = inlined_call_operand.vmem [shape: f32[8,16], index: 0, kind: input, shape index: {}]
  %s1 = inlined_call_operand.vmem [shape: f32[8,16], index: 1, kind: input, shape index: {}]
  %s2 = inlined_call_operand.vmem [shape: f32[16,32], index: 2, kind: input, shape index: {}]
  %s3 = inlined_call_operand.vmem [shape: f32[1,32], index: 3, kind: input, shape index: {}]
  %s4 = inlined_call_operand.vmem [shape: f32[32,4], index: 4, kind: input, shape index: {}]
  %s5 = inlined_call_operand.vmem [shape: f32[1,4], index: 5, kind: input, shape index: {}]
  %s6 = inlined_call_operand.vmem [shape: f32[14,4], index: 6, kind: input, shape index: {}]
  %s7 = inlined_call_operand.vmem [shape: f32[1,4], index: 7, kind: input, shape index: {}]
  %s8 = inlined_call_operand.vmem [shape: f32[4,32], index: 8, kind: input, shape index: {}]
  %s9 = inlined_call_operand.vmem [shape: f32[1,32], index: 9, kind: input, shape index: {}]
  %s10 = inlined_call_operand.vmem [shape: f32[32,16], index: 10, kind: input, shape index: {}]
  %s11 = inlined_call_operand.vmem [shape: f32[1,16], index: 11, kind: input, shape index: {}]
  %s12 = inlined_call_operand.vmem [shape: f32[8,4], index: 12, kind: output, shape index: {0}]
  %s13 = inlined_call_operand.vmem [shape: f32[8,4], index: 13, kind: output, shape index: {1}]
  %s14 = inlined_call_operand.vmem [shape: f32[8,4], index: 14, kind: output, shape index: {2}]
  %s15 = inlined_call_operand.hbm [shape: f32[8,16], index: 15, kind: output, shape index: {3}]
  %s16 = inlined_call_operand.hbm [shape: f32[8,16], index: 16, kind: output, shape index: {4}]
  %17 = xla_tuple %s12, %s13, %s14, %s15, %s16
  %s18 = sld [smem:[#allocation0]]
  $region90: #{net_forward.1} parent=0
    _
  %s20 = ssub.s32 1, %s18
  %s21 = scalar_select 0, %s20, %s18
  $region1: #{net_forward.1} parent=0
    #allocation2 [shape = 'u8[4096]{0}', space=vmem, size = 0x1000, scoped, tag = 'output window, operand 3, single buffered']
    #allocation3 [shape = 's32[1]{0}', space=sflag, size = 0x4, scoped, tag = 'scoped memory for net_forward.1']
    #allocation4 [shape = 'u8[4096]{0}', space=vmem, size = 0x1000, scoped, tag = 'output window, operand 4, single buffered']
    #allocation5 [shape = 's32[1]{0}', space=sflag, size = 0x4, scoped, tag = 'scoped memory for net_forward.1']
    %22 = vsyncpa [#allocation3], 0
    %23 = vsyncpa [#allocation5], 0
    // Predicated region
    $region2: #{net_forward.1} parent=1 // pred_check
      _
    $region3: #{net_forward.1} parent=1 // pred_check_branch
      %25 = sbr.rel (0) target = $region5
    $region4: #{net_forward.1} parent=1 // pred_region
      _
    $region5: #{net_forward.1} parent=1 // pred_fallthru
      _
    // Predicated region
    $region6: #{net_forward.1} parent=1 // pred_check
      _
    $region7: #{net_forward.1} parent=1 // pred_check_branch
      %27 = sbr.rel (0) target = $region9
    $region8: #{net_forward.1} parent=1 // pred_region
      _
    $region9: #{net_forward.1} parent=1 // pred_fallthru
      _
    // Predicated region
    $region10: #{net_forward.1} parent=1 // pred_check
      _
    $region11: #{net_forward.1} parent=1 // pred_check_branch
      %29 = sbr.rel (0) target = $region13
    $region12: #{net_forward.1} parent=1 // pred_region
      _
    $region13: #{net_forward.1} parent=1 // pred_fallthru
      _
    // Predicated region
    $region14: #{net_forward.1} parent=1 // pred_check
      _
    $region15: #{net_forward.1} parent=1 // pred_check_branch
      %31 = sbr.rel (0) target = $region17
    $region16: #{net_forward.1} parent=1 // pred_region
      _
    $region17: #{net_forward.1} parent=1 // pred_fallthru
      _
    // Predicated region
    $region18: #{net_forward.1} parent=1 // pred_check
      _
    $region19: #{net_forward.1} parent=1 // pred_check_branch
      %33 = sbr.rel (0) target = $region21
    $region20: #{net_forward.1} parent=1 // pred_region
      _
    $region21: #{net_forward.1} parent=1 // pred_fallthru
      _
    // Predicated region
    $region22: #{net_forward.1} parent=1 // pred_check
      _
    $region23: #{net_forward.1} parent=1 // pred_check_branch
      %35 = sbr.rel (0) target = $region25
    $region24: #{net_forward.1} parent=1 // pred_region
      _
    $region25: #{net_forward.1} parent=1 // pred_fallthru
      _
    // Predicated region
    $region26: #{net_forward.1} parent=1 // pred_check
      _
    $region27: #{net_forward.1} parent=1 // pred_check_branch
      %37 = sbr.rel (0) target = $region29
    $region28: #{net_forward.1} parent=1 // pred_region
      _
    $region29: #{net_forward.1} parent=1 // pred_fallthru
      _
    // Predicated region
    $region30: #{net_forward.1} parent=1 // pred_check
      _
    $region31: #{net_forward.1} parent=1 // pred_check_branch
      %39 = sbr.rel (0) target = $region33
    $region32: #{net_forward.1} parent=1 // pred_region
      _
    $region33: #{net_forward.1} parent=1 // pred_fallthru
      _
    // Predicated region
    $region34: #{net_forward.1} parent=1 // pred_check
      _
    $region35: #{net_forward.1} parent=1 // pred_check_branch
      %41 = sbr.rel (0) target = $region37
    $region36: #{net_forward.1} parent=1 // pred_region
      _
    $region37: #{net_forward.1} parent=1 // pred_fallthru
      _
    // Predicated region
    $region38: #{net_forward.1} parent=1 // pred_check
      _
    $region39: #{net_forward.1} parent=1 // pred_check_branch
      %43 = sbr.rel (0) target = $region41
    $region40: #{net_forward.1} parent=1 // pred_region
      _
    $region41: #{net_forward.1} parent=1 // pred_fallthru
      _
    // Predicated region
    $region42: #{net_forward.1} parent=1 // pred_check
      _
    $region43: #{net_forward.1} parent=1 // pred_check_branch
      %45 = sbr.rel (0) target = $region45
    $region44: #{net_forward.1} parent=1 // pred_region
      _
    $region45: #{net_forward.1} parent=1 // pred_fallthru
      _
    // Predicated region
    $region46: #{net_forward.1} parent=1 // pred_check
      _
    $region47: #{net_forward.1} parent=1 // pred_check_branch
      %47 = sbr.rel (0) target = $region49
    $region48: #{net_forward.1} parent=1 // pred_region
      _
    $region49: #{net_forward.1} parent=1 // pred_fallthru
      _
    %v48 = vld [vmem:[%s0] sm:$0xff]
    %v49 = vld [vmem:[%s1] sm:$0xff]
    %v50 = vld [vmem:[%s2] sm:$0xff]
    %v51 = vld [vmem:[%s2 + $0x8] sm:$0xff]
    %v52 = vld [vmem:[%s3] sm:$0x1]
    %v54 = vlaneseq
    %v55 = vshrl.u32 %v54, 7
    %v56 = vsub.s32 0, %v55
    %v57 = vrot.slane %v52, %v56
    %vm59 = vcmask 130048
    %v61 = vsel %vm59, %v48, 0
    %63 = vmatprep.subr.mxu0 0.0
    %64 = vmatpush1.msra.mxu0 %v50
    %65 = vmatprep.subr.mxu0 0.0
    %66 = vmatpush1.msra.mxu0 %v51
    %67 = vmatprep.subr.mxu0 0.0
    %68 = vmatpush1.msra.mxu0 0.0
    %69 = vmatprep.subr.mxu0 0.0
    %70 = vmatpush1.msra.mxu0 0.0
    %71 = vmatprep.subr.mxu0 0.0
    %72 = vmatpush1.msra.mxu0 0.0
    %73 = vmatprep.subr.mxu0 0.0
    %74 = vmatpush1.msra.mxu0 0.0
    %75 = vmatprep.subr.mxu0 0.0
    %76 = vmatpush1.msra.mxu0 0.0
    %77 = vmatprep.subr.mxu0 0.0
    %78 = vmatpush1.msra.mxu0 0.0
    %79 = vmatprep.subr.mxu0 0.0
    %80 = vmatpush1.msra.mxu0 0.0
    %81 = vmatprep.subr.mxu0 0.0
    %82 = vmatpush1.msra.mxu0 0.0
    %83 = vmatprep.subr.mxu0 0.0
    %84 = vmatpush1.msra.mxu0 0.0
    %85 = vmatprep.subr.mxu0 0.0
    %86 = vmatpush1.msra.mxu0 0.0
    %87 = vmatprep.subr.mxu0 0.0
    %88 = vmatpush1.msra.mxu0 0.0
    %89 = vmatprep.subr.mxu0 0.0
    %90 = vmatpush1.msra.mxu0 0.0
    %91 = vmatprep.subr.mxu0 0.0
    %92 = vmatpush1.msra.mxu0 0.0
    %93 = vmatprep.subr.mxu0 0.0
    %94 = vmatpush1.msra.mxu0 0.0
    %95 = vmatprep.subr.mxu0 0.0
    %96 = vmatpush1.msra.mxu0 0.0
    %97 = vmatprep.subr.mxu0 0.0
    %98 = vmatpush1.msra.mxu0 0.0
    %99 = vmatprep.subr.mxu0 0.0
    %100 = vmatpush1.msra.mxu0 0.0
    %101 = vmatprep.subr.mxu0 0.0
    %102 = vmatpush1.msra.mxu0 0.0
    %103 = vmatprep.subr.mxu0 0.0
    %104 = vmatpush1.msra.mxu0 0.0
    %105 = vmatprep.subr.mxu0 0.0
    %106 = vmatpush1.msra.mxu0 0.0
    %107 = vmatprep.subr.mxu0 0.0
    %108 = vmatpush1.msra.mxu0 0.0
    %109 = vmatprep.subr.mxu0 0.0
    %110 = vmatpush1.msra.mxu0 0.0
    %111 = vmatprep.subr.mxu0 0.0
    %112 = vmatpush1.msra.mxu0 0.0
    %113 = vmatprep.subr.mxu0 0.0
    %114 = vmatpush1.msra.mxu0 0.0
    %115 = vmatprep.subr.mxu0 0.0
    %116 = vmatpush1.msra.mxu0 0.0
    %117 = vmatprep.subr.mxu0 0.0
    %118 = vmatpush1.msra.mxu0 0.0
    %119 = vmatprep.subr.mxu0 0.0
    %120 = vmatpush1.msra.mxu0 0.0
    %121 = vmatprep.subr.mxu0 0.0
    %122 = vmatpush1.msra.mxu0 0.0
    %123 = vmatprep.subr.mxu0 0.0
    %124 = vmatpush1.msra.mxu0 0.0
    %125 = vmatprep.subr.mxu0 0.0
    %126 = vmatpush1.msra.mxu0 0.0
    %127 = vmatprep.mubr.f32.mxu0 0.0
    %128 = vmatmul.mubr.f32.gmra.mrb[0].mxu0 %v61
    %v129 = vpop.f32.mrb[0].mxu0
    %v130 = vadd.f32 %v57, %v129
    %v131 = vpop.f32.mrb[0].mxu0
    %132 = vdwg.mxu0
    %v134 = vsel %vm59, %v49, 0
    %136 = vmatprep.subr.mxu0 0.0
    %137 = vmatpush1.msra.mxu0 %v50
    %138 = vmatprep.subr.mxu0 0.0
    %139 = vmatpush1.msra.mxu0 %v51
    %140 = vmatprep.subr.mxu0 0.0
    %141 = vmatpush1.msra.mxu0 0.0
    %142 = vmatprep.subr.mxu0 0.0
    %143 = vmatpush1.msra.mxu0 0.0
    %144 = vmatprep.subr.mxu0 0.0
    %145 = vmatpush1.msra.mxu0 0.0
    %146 = vmatprep.subr.mxu0 0.0
    %147 = vmatpush1.msra.mxu0 0.0
    %148 = vmatprep.subr.mxu0 0.0
    %149 = vmatpush1.msra.mxu0 0.0
    %150 = vmatprep.subr.mxu0 0.0
    %151 = vmatpush1.msra.mxu0 0.0
    %152 = vmatprep.subr.mxu0 0.0
    %153 = vmatpush1.msra.mxu0 0.0
    %154 = vmatprep.subr.mxu0 0.0
    %155 = vmatpush1.msra.mxu0 0.0
    %156 = vmatprep.subr.mxu0 0.0
    %157 = vmatpush1.msra.mxu0 0.0
    %158 = vmatprep.subr.mxu0 0.0
    %159 = vmatpush1.msra.mxu0 0.0
    %160 = vmatprep.subr.mxu0 0.0
    %161 = vmatpush1.msra.mxu0 0.0
    %162 = vmatprep.subr.mxu0 0.0
    %163 = vmatpush1.msra.mxu0 0.0
    %164 = vmatprep.subr.mxu0 0.0
    %165 = vmatpush1.msra.mxu0 0.0
    %166 = vmatprep.subr.mxu0 0.0
    %167 = vmatpush1.msra.mxu0 0.0
    %168 = vmatprep.subr.mxu0 0.0
    %169 = vmatpush1.msra.mxu0 0.0
    %170 = vmatprep.subr.mxu0 0.0
    %171 = vmatpush1.msra.mxu0 0.0
    %172 = vmatprep.subr.mxu0 0.0
    %173 = vmatpush1.msra.mxu0 0.0
    %174 = vmatprep.subr.mxu0 0.0
    %175 = vmatpush1.msra.mxu0 0.0
    %176 = vmatprep.subr.mxu0 0.0
    %177 = vmatpush1.msra.mxu0 0.0
    %178 = vmatprep.subr.mxu0 0.0
    %179 = vmatpush1.msra.mxu0 0.0
    %180 = vmatprep.subr.mxu0 0.0
    %181 = vmatpush1.msra.mxu0 0.0
    %182 = vmatprep.subr.mxu0 0.0
    %183 = vmatpush1.msra.mxu0 0.0
    %184 = vmatprep.subr.mxu0 0.0
    %185 = vmatpush1.msra.mxu0 0.0
    %186 = vmatprep.subr.mxu0 0.0
    %187 = vmatpush1.msra.mxu0 0.0
    %188 = vmatprep.subr.mxu0 0.0
    %189 = vmatpush1.msra.mxu0 0.0
    %190 = vmatprep.subr.mxu0 0.0
    %191 = vmatpush1.msra.mxu0 0.0
    %192 = vmatprep.subr.mxu0 0.0
    %193 = vmatpush1.msra.mxu0 0.0
    %194 = vmatprep.subr.mxu0 0.0
    %195 = vmatpush1.msra.mxu0 0.0
    %196 = vmatprep.subr.mxu0 0.0
    %197 = vmatpush1.msra.mxu0 0.0
    %198 = vmatprep.subr.mxu0 0.0
    %199 = vmatpush1.msra.mxu0 0.0
    %200 = vmatprep.mubr.f32.mxu0 0.0
    %201 = vmatmul.mubr.f32.gmra.mrb[0].mxu0 %v134
    %v202 = vpop.f32.mrb[0].mxu0
    %v203 = vadd.f32 0.0, %v202
    %v204 = vpop.f32.mrb[0].mxu0
    %205 = vdwg.mxu0
    %v206 = vxor.u32 %v130, 2147483648
    %v207 = vmul.f32 %v206, 1.442695
    %v208 = vpow.pop %v207
    %v209 = vadd.f32 %v208, 1.0
    %v210 = vrcp.pop %v209
    %v211 = vmul.f32 1.0, %v210
    %v212 = vsub.f32 1.0, %v211
    %v213 = vmul.f32 %v211, %v212
    %v214 = vmul.f32 %v213, %v203
    %v215 = vld [vmem:[%s4] sm:$0xff]
    %v216 = vld [vmem:[%s4 + $0x8] sm:$0xff]
    %v217 = vld [vmem:[%s4 + $0x10] sm:$0xff]
    %v218 = vld [vmem:[%s4 + $0x18] sm:$0xff]
    %v219 = vld [vmem:[%s5] sm:$0x1]
    %v221 = vlaneseq
    %v222 = vshrl.u32 %v221, 7
    %v223 = vsub.s32 0, %v222
    %v224 = vrot.slane %v219, %v223
    %vm226 = vcmask 261120
    %v228 = vsel %vm226, %v211, 0
    %230 = vmatprep.subr.mxu0 0.0
    %231 = vmatpush1.msra.mxu0 %v215
    %232 = vmatprep.subr.mxu0 0.0
    %233 = vmatpush1.msra.mxu0 %v216
    %234 = vmatprep.subr.mxu0 0.0
    %235 = vmatpush1.msra.mxu0 %v217
    %236 = vmatprep.subr.mxu0 0.0
    %237 = vmatpush1.msra.mxu0 %v218
    %238 = vmatprep.subr.mxu0 0.0
    %239 = vmatpush1.msra.mxu0 0.0
    %240 = vmatprep.subr.mxu0 0.0
    %241 = vmatpush1.msra.mxu0 0.0
    %242 = vmatprep.subr.mxu0 0.0
    %243 = vmatpush1.msra.mxu0 0.0
    %244 = vmatprep.subr.mxu0 0.0
    %245 = vmatpush1.msra.mxu0 0.0
    %246 = vmatprep.subr.mxu0 0.0
    %247 = vmatpush1.msra.mxu0 0.0
    %248 = vmatprep.subr.mxu0 0.0
    %249 = vmatpush1.msra.mxu0 0.0
    %250 = vmatprep.subr.mxu0 0.0
    %251 = vmatpush1.msra.mxu0 0.0
    %252 = vmatprep.subr.mxu0 0.0
    %253 = vmatpush1.msra.mxu0 0.0
    %254 = vmatprep.subr.mxu0 0.0
    %255 = vmatpush1.msra.mxu0 0.0
    %256 = vmatprep.subr.mxu0 0.0
    %257 = vmatpush1.msra.mxu0 0.0
    %258 = vmatprep.subr.mxu0 0.0
    %259 = vmatpush1.msra.mxu0 0.0
    %260 = vmatprep.subr.mxu0 0.0
    %261 = vmatpush1.msra.mxu0 0.0
    %262 = vmatprep.subr.mxu0 0.0
    %263 = vmatpush1.msra.mxu0 0.0
    %264 = vmatprep.subr.mxu0 0.0
    %265 = vmatpush1.msra.mxu0 0.0
    %266 = vmatprep.subr.mxu0 0.0
    %267 = vmatpush1.msra.mxu0 0.0
    %268 = vmatprep.subr.mxu0 0.0
    %269 = vmatpush1.msra.mxu0 0.0
    %270 = vmatprep.subr.mxu0 0.0
    %271 = vmatpush1.msra.mxu0 0.0
    %272 = vmatprep.subr.mxu0 0.0
    %273 = vmatpush1.msra.mxu0 0.0
    %274 = vmatprep.subr.mxu0 0.0
    %275 = vmatpush1.msra.mxu0 0.0
    %276 = vmatprep.subr.mxu0 0.0
    %277 = vmatpush1.msra.mxu0 0.0
    %278 = vmatprep.subr.mxu0 0.0
    %279 = vmatpush1.msra.mxu0 0.0
    %280 = vmatprep.subr.mxu0 0.0
    %281 = vmatpush1.msra.mxu0 0.0
    %282 = vmatprep.subr.mxu0 0.0
    %283 = vmatpush1.msra.mxu0 0.0
    %284 = vmatprep.subr.mxu0 0.0
    %285 = vmatpush1.msra.mxu0 0.0
    %286 = vmatprep.subr.mxu0 0.0
    %287 = vmatpush1.msra.mxu0 0.0
    %288 = vmatprep.subr.mxu0 0.0
    %289 = vmatpush1.msra.mxu0 0.0
    %290 = vmatprep.subr.mxu0 0.0
    %291 = vmatpush1.msra.mxu0 0.0
    %292 = vmatprep.subr.mxu0 0.0
    %293 = vmatpush1.msra.mxu0 0.0
    %294 = vmatprep.mubr.f32.mxu0 0.0
    %295 = vmatmul.mubr.f32.gmra.mrb[0].mxu0 %v228
    %v296 = vpop.f32.mrb[0].mxu0
    %v297 = vadd.f32 %v224, %v296
    %v298 = vpop.f32.mrb[0].mxu0
    %299 = vdwg.mxu0
    %v301 = vsel %vm226, %v214, 0
    %303 = vmatprep.subr.mxu0 0.0
    %304 = vmatpush1.msra.mxu0 %v215
    %305 = vmatprep.subr.mxu0 0.0
    %306 = vmatpush1.msra.mxu0 %v216
    %307 = vmatprep.subr.mxu0 0.0
    %308 = vmatpush1.msra.mxu0 %v217
    %309 = vmatprep.subr.mxu0 0.0
    %310 = vmatpush1.msra.mxu0 %v218
    %311 = vmatprep.subr.mxu0 0.0
    %312 = vmatpush1.msra.mxu0 0.0
    %313 = vmatprep.subr.mxu0 0.0
    %314 = vmatpush1.msra.mxu0 0.0
    %315 = vmatprep.subr.mxu0 0.0
    %316 = vmatpush1.msra.mxu0 0.0
    %317 = vmatprep.subr.mxu0 0.0
    %318 = vmatpush1.msra.mxu0 0.0
    %319 = vmatprep.subr.mxu0 0.0
    %320 = vmatpush1.msra.mxu0 0.0
    %321 = vmatprep.subr.mxu0 0.0
    %322 = vmatpush1.msra.mxu0 0.0
    %323 = vmatprep.subr.mxu0 0.0
    %324 = vmatpush1.msra.mxu0 0.0
    %325 = vmatprep.subr.mxu0 0.0
    %326 = vmatpush1.msra.mxu0 0.0
    %327 = vmatprep.subr.mxu0 0.0
    %328 = vmatpush1.msra.mxu0 0.0
    %329 = vmatprep.subr.mxu0 0.0
    %330 = vmatpush1.msra.mxu0 0.0
    %331 = vmatprep.subr.mxu0 0.0
    %332 = vmatpush1.msra.mxu0 0.0
    %333 = vmatprep.subr.mxu0 0.0
    %334 = vmatpush1.msra.mxu0 0.0
    %335 = vmatprep.subr.mxu0 0.0
    %336 = vmatpush1.msra.mxu0 0.0
    %337 = vmatprep.subr.mxu0 0.0
    %338 = vmatpush1.msra.mxu0 0.0
    %339 = vmatprep.subr.mxu0 0.0
    %340 = vmatpush1.msra.mxu0 0.0
    %341 = vmatprep.subr.mxu0 0.0
    %342 = vmatpush1.msra.mxu0 0.0
    %343 = vmatprep.subr.mxu0 0.0
    %344 = vmatpush1.msra.mxu0 0.0
    %345 = vmatprep.subr.mxu0 0.0
    %346 = vmatpush1.msra.mxu0 0.0
    %347 = vmatprep.subr.mxu0 0.0
    %348 = vmatpush1.msra.mxu0 0.0
    %349 = vmatprep.subr.mxu0 0.0
    %350 = vmatpush1.msra.mxu0 0.0
    %351 = vmatprep.subr.mxu0 0.0
    %352 = vmatpush1.msra.mxu0 0.0
    %353 = vmatprep.subr.mxu0 0.0
    %354 = vmatpush1.msra.mxu0 0.0
    %355 = vmatprep.subr.mxu0 0.0
    %356 = vmatpush1.msra.mxu0 0.0
    %357 = vmatprep.subr.mxu0 0.0
    %358 = vmatpush1.msra.mxu0 0.0
    %359 = vmatprep.subr.mxu0 0.0
    %360 = vmatpush1.msra.mxu0 0.0
    %361 = vmatprep.subr.mxu0 0.0
    %362 = vmatpush1.msra.mxu0 0.0
    %363 = vmatprep.subr.mxu0 0.0
    %364 = vmatpush1.msra.mxu0 0.0
    %365 = vmatprep.subr.mxu0 0.0
    %366 = vmatpush1.msra.mxu0 0.0
    %367 = vmatprep.mubr.f32.mxu0 0.0
    %368 = vmatmul.mubr.f32.gmra.mrb[0].mxu0 %v301
    %v369 = vpop.f32.mrb[0].mxu0
    %v370 = vadd.f32 0.0, %v369
    %v371 = vpop.f32.mrb[0].mxu0
    %372 = vdwg.mxu0
    %vm373 = vcmask 31744
    %374 = vst.msk [vmem:[%s12] sm:$0xff] %vm373, %v297
    %375 = vst.msk [vmem:[%s13] sm:$0xff] %vm373, %v370
    %377 = vset.pattern.permute.xlu0 0
    %378 = vperm.xlu0 %377, %v297
    %v379 = vpop.permute.xlu0 %378
    %v381 = vmul.f32 %v379, %v297
    %382 = vset.pattern.permute.xlu0 1
    %383 = vperm.xlu0 %382, %v297
    %v384 = vpop.permute.xlu0 %383
    %v386 = vmul.f32 %v384, %v297
    %387 = vset.pattern.permute.xlu0 2
    %388 = vperm.xlu0 %387, %v297
    %v389 = vpop.permute.xlu0 %388
    %v391 = vmul.f32 %v389, %v297
    %v392 = vmul.f32 %v297, %v297
    %394 = vrot.lane.b32.xlu0 %v381, 4
    %v395 = vpop.permute.xlu0 %394
    %398 = vrot.lane.b32.xlu0 %v386, 7
    %v399 = vpop.permute.xlu0 %398
    %402 = vrot.lane.b32.xlu0 %v391, 9
    %v403 = vpop.permute.xlu0 %402
    %406 = vrot.lane.b32.xlu0 %v392, 10
    %v407 = vpop.permute.xlu0 %406
    %v409 = vsel %vm373, %v297, %v395
    %vm410 = vcmask 64512
    %v411 = vsel %vm410, %v409, %v399
    %vm412 = vcmask 89088
    %v413 = vsel %vm412, %v411, %v403
    %vm414 = vcmask 105472
    %v415 = vsel %vm414, %v413, %v407
    %v416 = vld [vmem:[%s6] sm:$0xff]
    %v417 = vld [vmem:[%s6 + $0x8] sm:$0x3f]
    %v418 = vld [vmem:[%s7] sm:$0x1]
    %v420 = vlaneseq
    %v421 = vshrl.u32 %v420, 7
    %v422 = vsub.s32 0, %v421
    %v423 = vrot.slane %v418, %v422
    %vm425 = vcmask 113664
    %v427 = vsel %vm425, %v415, 0
    %vm429 = vcmask 1045504
    %v431 = vsel %vm429, %v417, 0
    %433 = vmatprep.subr.mxu0 0.0
    %434 = vmatpush1.msra.mxu0 %v416
    %435 = vmatprep.subr.mxu0 0.0
    %436 = vmatpush1.msra.mxu0 %v431
    %437 = vmatprep.subr.mxu0 0.0
    %438 = vmatpush1.msra.mxu0 0.0
    %439 = vmatprep.subr.mxu0 0.0
    %440 = vmatpush1.msra.mxu0 0.0
    %441 = vmatprep.subr.mxu0 0.0
    %442 = vmatpush1.msra.mxu0 0.0
    %443 = vmatprep.subr.mxu0 0.0
    %444 = vmatpush1.msra.mxu0 0.0
    %445 = vmatprep.subr.mxu0 0.0
    %446 = vmatpush1.msra.mxu0 0.0
    %447 = vmatprep.subr.mxu0 0.0
    %448 = vmatpush1.msra.mxu0 0.0
    %449 = vmatprep.subr.mxu0 0.0
    %450 = vmatpush1.msra.mxu0 0.0
    %451 = vmatprep.subr.mxu0 0.0
    %452 = vmatpush1.msra.mxu0 0.0
    %453 = vmatprep.subr.mxu0 0.0
    %454 = vmatpush1.msra.mxu0 0.0
    %455 = vmatprep.subr.mxu0 0.0
    %456 = vmatpush1.msra.mxu0 0.0
    %457 = vmatprep.subr.mxu0 0.0
    %458 = vmatpush1.msra.mxu0 0.0
    %459 = vmatprep.subr.mxu0 0.0
    %460 = vmatpush1.msra.mxu0 0.0
    %461 = vmatprep.subr.mxu0 0.0
    %462 = vmatpush1.msra.mxu0 0.0
    %463 = vmatprep.subr.mxu0 0.0
    %464 = vmatpush1.msra.mxu0 0.0
    %465 = vmatprep.subr.mxu0 0.0
    %466 = vmatpush1.msra.mxu0 0.0
    %467 = vmatprep.subr.mxu0 0.0
    %468 = vmatpush1.msra.mxu0 0.0
    %469 = vmatprep.subr.mxu0 0.0
    %470 = vmatpush1.msra.mxu0 0.0
    %471 = vmatprep.subr.mxu0 0.0
    %472 = vmatpush1.msra.mxu0 0.0
    %473 = vmatprep.subr.mxu0 0.0
    %474 = vmatpush1.msra.mxu0 0.0
    %475 = vmatprep.subr.mxu0 0.0
    %476 = vmatpush1.msra.mxu0 0.0
    %477 = vmatprep.subr.mxu0 0.0
    %478 = vmatpush1.msra.mxu0 0.0
    %479 = vmatprep.subr.mxu0 0.0
    %480 = vmatpush1.msra.mxu0 0.0
    %481 = vmatprep.subr.mxu0 0.0
    %482 = vmatpush1.msra.mxu0 0.0
    %483 = vmatprep.subr.mxu0 0.0
    %484 = vmatpush1.msra.mxu0 0.0
    %485 = vmatprep.subr.mxu0 0.0
    %486 = vmatpush1.msra.mxu0 0.0
    %487 = vmatprep.subr.mxu0 0.0
    %488 = vmatpush1.msra.mxu0 0.0
    %489 = vmatprep.subr.mxu0 0.0
    %490 = vmatpush1.msra.mxu0 0.0
    %491 = vmatprep.subr.mxu0 0.0
    %492 = vmatpush1.msra.mxu0 0.0
    %493 = vmatprep.subr.mxu0 0.0
    %494 = vmatpush1.msra.mxu0 0.0
    %495 = vmatprep.subr.mxu0 0.0
    %496 = vmatpush1.msra.mxu0 0.0
    %497 = vmatprep.mubr.f32.mxu0 0.0
    %498 = vmatmul.mubr.f32.gmra.mrb[0].mxu0 %v427
    %v499 = vpop.f32.mrb[0].mxu0
    %v500 = vadd.f32 %v423, %v499
    %v501 = vpop.f32.mrb[0].mxu0
    %502 = vdwg.mxu0
    %503 = vst.msk [vmem:[%s14] sm:$0xff] %vm373, %v500
    %v504 = vld [vmem:[%s8] sm:$0xf]
    %v505 = vld [vmem:[%s9] sm:$0x1]
    %v507 = vlaneseq
    %v508 = vshrl.u32 %v507, 7
    %v509 = vsub.s32 0, %v508
    %v510 = vrot.slane %v505, %v509
    %v512 = vsel %vm373, %v297, 0
    %vm514 = vcmask 1043456
    %v516 = vsel %vm514, %v504, 0
    %518 = vmatprep.subr.mxu0 0.0
    %519 = vmatpush1.msra.mxu0 %v516
    %520 = vmatprep.subr.mxu0 0.0
    %521 = vmatpush1.msra.mxu0 0.0
    %522 = vmatprep.subr.mxu0 0.0
    %523 = vmatpush1.msra.mxu0 0.0
    %524 = vmatprep.subr.mxu0 0.0
    %525 = vmatpush1.msra.mxu0 0.0
    %526 = vmatprep.subr.mxu0 0.0
    %527 = vmatpush1.msra.mxu0 0.0
    %528 = vmatprep.subr.mxu0 0.0
    %529 = vmatpush1.msra.mxu0 0.0
    %530 = vmatprep.subr.mxu0 0.0
    %531 = vmatpush1.msra.mxu0 0.0
    %532 = vmatprep.subr.mxu0 0.0
    %533 = vmatpush1.msra.mxu0 0.0
    %534 = vmatprep.subr.mxu0 0.0
    %535 = vmatpush1.msra.mxu0 0.0
    %536 = vmatprep.subr.mxu0 0.0
    %537 = vmatpush1.msra.mxu0 0.0
    %538 = vmatprep.subr.mxu0 0.0
    %539 = vmatpush1.msra.mxu0 0.0
    %540 = vmatprep.subr.mxu0 0.0
    %541 = vmatpush1.msra.mxu0 0.0
    %542 = vmatprep.subr.mxu0 0.0
    %543 = vmatpush1.msra.mxu0 0.0
    %544 = vmatprep.subr.mxu0 0.0
    %545 = vmatpush1.msra.mxu0 0.0
    %546 = vmatprep.subr.mxu0 0.0
    %547 = vmatpush1.msra.mxu0 0.0
    %548 = vmatprep.subr.mxu0 0.0
    %549 = vmatpush1.msra.mxu0 0.0
    %550 = vmatprep.subr.mxu0 0.0
    %551 = vmatpush1.msra.mxu0 0.0
    %552 = vmatprep.subr.mxu0 0.0
    %553 = vmatpush1.msra.mxu0 0.0
    %554 = vmatprep.subr.mxu0 0.0
    %555 = vmatpush1.msra.mxu0 0.0
    %556 = vmatprep.subr.mxu0 0.0
    %557 = vmatpush1.msra.mxu0 0.0
    %558 = vmatprep.subr.mxu0 0.0
    %559 = vmatpush1.msra.mxu0 0.0
    %560 = vmatprep.subr.mxu0 0.0
    %561 = vmatpush1.msra.mxu0 0.0
    %562 = vmatprep.subr.mxu0 0.0
    %563 = vmatpush1.msra.mxu0 0.0
    %564 = vmatprep.subr.mxu0 0.0
    %565 = vmatpush1.msra.mxu0 0.0
    %566 = vmatprep.subr.mxu0 0.0
    %567 = vmatpush1.msra.mxu0 0.0
    %568 = vmatprep.subr.mxu0 0.0
    %569 = vmatpush1.msra.mxu0 0.0
    %570 = vmatprep.subr.mxu0 0.0
    %571 = vmatpush1.msra.mxu0 0.0
    %572 = vmatprep.subr.mxu0 0.0
    %573 = vmatpush1.msra.mxu0 0.0
    %574 = vmatprep.subr.mxu0 0.0
    %575 = vmatpush1.msra.mxu0 0.0
    %576 = vmatprep.subr.mxu0 0.0
    %577 = vmatpush1.msra.mxu0 0.0
    %578 = vmatprep.subr.mxu0 0.0
    %579 = vmatpush1.msra.mxu0 0.0
    %580 = vmatprep.subr.mxu0 0.0
    %581 = vmatpush1.msra.mxu0 0.0
    %582 = vmatprep.mubr.f32.mxu0 0.0
    %583 = vmatmul.mubr.f32.gmra.mrb[0].mxu0 %v512
    %v584 = vpop.f32.mrb[0].mxu0
    %v585 = vadd.f32 %v510, %v584
    %v586 = vpop.f32.mrb[0].mxu0
    %587 = vdwg.mxu0
    %v589 = vsel %vm373, %v500, 0
    %591 = vmatprep.subr.mxu0 0.0
    %592 = vmatpush1.msra.mxu0 %v516
    %593 = vmatprep.subr.mxu0 0.0
    %594 = vmatpush1.msra.mxu0 0.0
    %595 = vmatprep.subr.mxu0 0.0
    %596 = vmatpush1.msra.mxu0 0.0
    %597 = vmatprep.subr.mxu0 0.0
    %598 = vmatpush1.msra.mxu0 0.0
    %599 = vmatprep.subr.mxu0 0.0
    %600 = vmatpush1.msra.mxu0 0.0
    %601 = vmatprep.subr.mxu0 0.0
    %602 = vmatpush1.msra.mxu0 0.0
    %603 = vmatprep.subr.mxu0 0.0
    %604 = vmatpush1.msra.mxu0 0.0
    %605 = vmatprep.subr.mxu0 0.0
    %606 = vmatpush1.msra.mxu0 0.0
    %607 = vmatprep.subr.mxu0 0.0
    %608 = vmatpush1.msra.mxu0 0.0
    %609 = vmatprep.subr.mxu0 0.0
    %610 = vmatpush1.msra.mxu0 0.0
    %611 = vmatprep.subr.mxu0 0.0
    %612 = vmatpush1.msra.mxu0 0.0
    %613 = vmatprep.subr.mxu0 0.0
    %614 = vmatpush1.msra.mxu0 0.0
    %615 = vmatprep.subr.mxu0 0.0
    %616 = vmatpush1.msra.mxu0 0.0
    %617 = vmatprep.subr.mxu0 0.0
    %618 = vmatpush1.msra.mxu0 0.0
    %619 = vmatprep.subr.mxu0 0.0
    %620 = vmatpush1.msra.mxu0 0.0
    %621 = vmatprep.subr.mxu0 0.0
    %622 = vmatpush1.msra.mxu0 0.0
    %623 = vmatprep.subr.mxu0 0.0
    %624 = vmatpush1.msra.mxu0 0.0
    %625 = vmatprep.subr.mxu0 0.0
    %626 = vmatpush1.msra.mxu0 0.0
    %627 = vmatprep.subr.mxu0 0.0
    %628 = vmatpush1.msra.mxu0 0.0
    %629 = vmatprep.subr.mxu0 0.0
    %630 = vmatpush1.msra.mxu0 0.0
    %631 = vmatprep.subr.mxu0 0.0
    %632 = vmatpush1.msra.mxu0 0.0
    %633 = vmatprep.subr.mxu0 0.0
    %634 = vmatpush1.msra.mxu0 0.0
    %635 = vmatprep.subr.mxu0 0.0
    %636 = vmatpush1.msra.mxu0 0.0
    %637 = vmatprep.subr.mxu0 0.0
    %638 = vmatpush1.msra.mxu0 0.0
    %639 = vmatprep.subr.mxu0 0.0
    %640 = vmatpush1.msra.mxu0 0.0
    %641 = vmatprep.subr.mxu0 0.0
    %642 = vmatpush1.msra.mxu0 0.0
    %643 = vmatprep.subr.mxu0 0.0
    %644 = vmatpush1.msra.mxu0 0.0
    %645 = vmatprep.subr.mxu0 0.0
    %646 = vmatpush1.msra.mxu0 0.0
    %647 = vmatprep.subr.mxu0 0.0
    %648 = vmatpush1.msra.mxu0 0.0
    %649 = vmatprep.subr.mxu0 0.0
    %650 = vmatpush1.msra.mxu0 0.0
    %651 = vmatprep.subr.mxu0 0.0
    %652 = vmatpush1.msra.mxu0 0.0
    %653 = vmatprep.subr.mxu0 0.0
    %654 = vmatpush1.msra.mxu0 0.0
    %655 = vmatprep.mubr.f32.mxu0 0.0
    %656 = vmatmul.mubr.f32.gmra.mrb[0].mxu0 %v589
    %v657 = vpop.f32.mrb[0].mxu0
    %v658 = vadd.f32 0.0, %v657
    %v659 = vpop.f32.mrb[0].mxu0
    %660 = vdwg.mxu0
    %v661 = vxor.u32 %v585, 2147483648
    %v662 = vmul.f32 %v661, 1.442695
    %v663 = vpow.pop %v662
    %v664 = vadd.f32 %v663, 1.0
    %v665 = vrcp.pop %v664
    %v666 = vmul.f32 1.0, %v665
    %v667 = vsub.f32 1.0, %v666
    %v668 = vmul.f32 %v666, %v667
    %v669 = vmul.f32 %v668, %v658
    %v670 = vld [vmem:[%s10] sm:$0xff]
    %v671 = vld [vmem:[%s10 + $0x8] sm:$0xff]
    %v672 = vld [vmem:[%s10 + $0x10] sm:$0xff]
    %v673 = vld [vmem:[%s10 + $0x18] sm:$0xff]
    %v674 = vld [vmem:[%s11] sm:$0x1]
    %v676 = vlaneseq
    %v677 = vshrl.u32 %v676, 7
    %v678 = vsub.s32 0, %v677
    %v679 = vrot.slane %v674, %v678
    %v682 = vsel %vm226, %v666, 0
    %684 = vmatprep.subr.mxu0 0.0
    %685 = vmatpush1.msra.mxu0 %v670
    %686 = vmatprep.subr.mxu0 0.0
    %687 = vmatpush1.msra.mxu0 %v671
    %688 = vmatprep.subr.mxu0 0.0
    %689 = vmatpush1.msra.mxu0 %v672
    %690 = vmatprep.subr.mxu0 0.0
    %691 = vmatpush1.msra.mxu0 %v673
    %692 = vmatprep.subr.mxu0 0.0
    %693 = vmatpush1.msra.mxu0 0.0
    %694 = vmatprep.subr.mxu0 0.0
    %695 = vmatpush1.msra.mxu0 0.0
    %696 = vmatprep.subr.mxu0 0.0
    %697 = vmatpush1.msra.mxu0 0.0
    %698 = vmatprep.subr.mxu0 0.0
    %699 = vmatpush1.msra.mxu0 0.0
    %700 = vmatprep.subr.mxu0 0.0
    %701 = vmatpush1.msra.mxu0 0.0
    %702 = vmatprep.subr.mxu0 0.0
    %703 = vmatpush1.msra.mxu0 0.0
    %704 = vmatprep.subr.mxu0 0.0
    %705 = vmatpush1.msra.mxu0 0.0
    %706 = vmatprep.subr.mxu0 0.0
    %707 = vmatpush1.msra.mxu0 0.0
    %708 = vmatprep.subr.mxu0 0.0
    %709 = vmatpush1.msra.mxu0 0.0
    %710 = vmatprep.subr.mxu0 0.0
    %711 = vmatpush1.msra.mxu0 0.0
    %712 = vmatprep.subr.mxu0 0.0
    %713 = vmatpush1.msra.mxu0 0.0
    %714 = vmatprep.subr.mxu0 0.0
    %715 = vmatpush1.msra.mxu0 0.0
    %716 = vmatprep.subr.mxu0 0.0
    %717 = vmatpush1.msra.mxu0 0.0
    %718 = vmatprep.subr.mxu0 0.0
    %719 = vmatpush1.msra.mxu0 0.0
    %720 = vmatprep.subr.mxu0 0.0
    %721 = vmatpush1.msra.mxu0 0.0
    %722 = vmatprep.subr.mxu0 0.0
    %723 = vmatpush1.msra.mxu0 0.0
    %724 = vmatprep.subr.mxu0 0.0
    %725 = vmatpush1.msra.mxu0 0.0
    %726 = vmatprep.subr.mxu0 0.0
    %727 = vmatpush1.msra.mxu0 0.0
    %728 = vmatprep.subr.mxu0 0.0
    %729 = vmatpush1.msra.mxu0 0.0
    %730 = vmatprep.subr.mxu0 0.0
    %731 = vmatpush1.msra.mxu0 0.0
    %732 = vmatprep.subr.mxu0 0.0
    %733 = vmatpush1.msra.mxu0 0.0
    %734 = vmatprep.subr.mxu0 0.0
    %735 = vmatpush1.msra.mxu0 0.0
    %736 = vmatprep.subr.mxu0 0.0
    %737 = vmatpush1.msra.mxu0 0.0
    %738 = vmatprep.subr.mxu0 0.0
    %739 = vmatpush1.msra.mxu0 0.0
    %740 = vmatprep.subr.mxu0 0.0
    %741 = vmatpush1.msra.mxu0 0.0
    %742 = vmatprep.subr.mxu0 0.0
    %743 = vmatpush1.msra.mxu0 0.0
    %744 = vmatprep.subr.mxu0 0.0
    %745 = vmatpush1.msra.mxu0 0.0
    %746 = vmatprep.subr.mxu0 0.0
    %747 = vmatpush1.msra.mxu0 0.0
    %748 = vmatprep.mubr.f32.mxu0 0.0
    %749 = vmatmul.mubr.f32.gmra.mrb[0].mxu0 %v682
    %v750 = vpop.f32.mrb[0].mxu0
    %v751 = vadd.f32 %v679, %v750
    %v752 = vpop.f32.mrb[0].mxu0
    %753 = vdwg.mxu0
    %v755 = vsel %vm226, %v669, 0
    %757 = vmatprep.subr.mxu0 0.0
    %758 = vmatpush1.msra.mxu0 %v670
    %759 = vmatprep.subr.mxu0 0.0
    %760 = vmatpush1.msra.mxu0 %v671
    %761 = vmatprep.subr.mxu0 0.0
    %762 = vmatpush1.msra.mxu0 %v672
    %763 = vmatprep.subr.mxu0 0.0
    %764 = vmatpush1.msra.mxu0 %v673
    %765 = vmatprep.subr.mxu0 0.0
    %766 = vmatpush1.msra.mxu0 0.0
    %767 = vmatprep.subr.mxu0 0.0
    %768 = vmatpush1.msra.mxu0 0.0
    %769 = vmatprep.subr.mxu0 0.0
    %770 = vmatpush1.msra.mxu0 0.0
    %771 = vmatprep.subr.mxu0 0.0
    %772 = vmatpush1.msra.mxu0 0.0
    %773 = vmatprep.subr.mxu0 0.0
    %774 = vmatpush1.msra.mxu0 0.0
    %775 = vmatprep.subr.mxu0 0.0
    %776 = vmatpush1.msra.mxu0 0.0
    %777 = vmatprep.subr.mxu0 0.0
    %778 = vmatpush1.msra.mxu0 0.0
    %779 = vmatprep.subr.mxu0 0.0
    %780 = vmatpush1.msra.mxu0 0.0
    %781 = vmatprep.subr.mxu0 0.0
    %782 = vmatpush1.msra.mxu0 0.0
    %783 = vmatprep.subr.mxu0 0.0
    %784 = vmatpush1.msra.mxu0 0.0
    %785 = vmatprep.subr.mxu0 0.0
    %786 = vmatpush1.msra.mxu0 0.0
    %787 = vmatprep.subr.mxu0 0.0
    %788 = vmatpush1.msra.mxu0 0.0
    %789 = vmatprep.subr.mxu0 0.0
    %790 = vmatpush1.msra.mxu0 0.0
    %791 = vmatprep.subr.mxu0 0.0
    %792 = vmatpush1.msra.mxu0 0.0
    %793 = vmatprep.subr.mxu0 0.0
    %794 = vmatpush1.msra.mxu0 0.0
    %795 = vmatprep.subr.mxu0 0.0
    %796 = vmatpush1.msra.mxu0 0.0
    %797 = vmatprep.subr.mxu0 0.0
    %798 = vmatpush1.msra.mxu0 0.0
    %799 = vmatprep.subr.mxu0 0.0
    %800 = vmatpush1.msra.mxu0 0.0
    %801 = vmatprep.subr.mxu0 0.0
    %802 = vmatpush1.msra.mxu0 0.0
    %803 = vmatprep.subr.mxu0 0.0
    %804 = vmatpush1.msra.mxu0 0.0
    %805 = vmatprep.subr.mxu0 0.0
    %806 = vmatpush1.msra.mxu0 0.0
    %807 = vmatprep.subr.mxu0 0.0
    %808 = vmatpush1.msra.mxu0 0.0
    %809 = vmatprep.subr.mxu0 0.0
    %810 = vmatpush1.msra.mxu0 0.0
    %811 = vmatprep.subr.mxu0 0.0
    %812 = vmatpush1.msra.mxu0 0.0
    %813 = vmatprep.subr.mxu0 0.0
    %814 = vmatpush1.msra.mxu0 0.0
    %815 = vmatprep.subr.mxu0 0.0
    %816 = vmatpush1.msra.mxu0 0.0
    %817 = vmatprep.subr.mxu0 0.0
    %818 = vmatpush1.msra.mxu0 0.0
    %819 = vmatprep.subr.mxu0 0.0
    %820 = vmatpush1.msra.mxu0 0.0
    %821 = vmatprep.mubr.f32.mxu0 0.0
    %822 = vmatmul.mubr.f32.gmra.mrb[0].mxu0 %v755
    %v823 = vpop.f32.mrb[0].mxu0
    %v824 = vadd.f32 0.0, %v823
    %v825 = vpop.f32.mrb[0].mxu0
    %826 = vdwg.mxu0
    %827 = vst.msk [vmem:[#allocation2] sm:$0xff] %vm59, %v751
    %828 = vst.msk [vmem:[#allocation4] sm:$0xff] %vm59, %v824
    // Predicated region
    $region50: #{net_forward.1} parent=1 // pred_check
      _
    $region51: #{net_forward.1} parent=1 // pred_check_branch
      %830 = sbr.rel (0) target = $region53
    $region52: #{net_forward.1} parent=1 // pred_region
      _
    $region53: #{net_forward.1} parent=1 // pred_fallthru
      _
    // Predicated region
    $region54: #{net_forward.1} parent=1 // pred_check
      _
    $region55: #{net_forward.1} parent=1 // pred_check_branch
      %832 = sbr.rel (0) target = $region57
    $region56: #{net_forward.1} parent=1 // pred_region
      _
    $region57: #{net_forward.1} parent=1 // pred_fallthru
      _
    // Predicated region
    $region58: #{net_forward.1} parent=1 // pred_check
      _
    $region59: #{net_forward.1} parent=1 // pred_check_branch
      %834 = sbr.rel (0) target = $region61
    $region60: #{net_forward.1} parent=1 // pred_region
      _
    $region61: #{net_forward.1} parent=1 // pred_fallthru
      _
    // Predicated region
    $region62: #{net_forward.1} parent=1 // pred_check
      _
    $region63: #{net_forward.1} parent=1 // pred_check_branch
      %836 = sbr.rel (0) target = $region65
    $region64: #{net_forward.1} parent=1 // pred_region
      %s838 = ssub.s32 128, 128
      %839 = vsyncadd [#allocation3], %s838
      %s841 = sshll.u32 [#allocation2], 4
      %s842 = int_to_ptr.vmem [resolvable:$true] %s841
      %844 = dma.vmem_to_hbm [thread:$0]  %s842, 128, %s15, [#allocation3]
    $region65: #{net_forward.1} parent=1 // pred_fallthru
      _
    // Predicated region
    $region66: #{net_forward.1} parent=1 // pred_check
      _
    $region67: #{net_forward.1} parent=1 // pred_check_branch
      %846 = sbr.rel (0) target = $region69
    $region68: #{net_forward.1} parent=1 // pred_region
      %s848 = ssub.s32 128, 128
      %849 = vsyncadd [#allocation5], %s848
      %s851 = sshll.u32 [#allocation4], 4
      %s852 = int_to_ptr.vmem [resolvable:$true] %s851
      %854 = dma.vmem_to_hbm [thread:$0]  %s852, 128, %s16, [#allocation5]
    $region69: #{net_forward.1} parent=1 // pred_fallthru
      _
    // Predicated region
    $region70: #{net_forward.1} parent=1 // pred_check
      _
    $region71: #{net_forward.1} parent=1 // pred_check_branch
      %856 = sbr.rel (0) target = $region73
    $region72: #{net_forward.1} parent=1 // pred_region
      _
    $region73: #{net_forward.1} parent=1 // pred_fallthru
      _
    // Predicated region
    $region74: #{net_forward.1} parent=1 // pred_check
      _
    $region75: #{net_forward.1} parent=1 // pred_check_branch
      %858 = sbr.rel (0) target = $region77
    $region76: #{net_forward.1} parent=1 // pred_region
      _
    $region77: #{net_forward.1} parent=1 // pred_fallthru
      _
    // Predicated region
    $region78: #{net_forward.1} parent=1 // pred_check
      _
    $region79: #{net_forward.1} parent=1 // pred_check_branch
      %860 = sbr.rel (0) target = $region81
    $region80: #{net_forward.1} parent=1 // pred_region
      _
    $region81: #{net_forward.1} parent=1 // pred_fallthru
      _
    // Predicated region
    $region82: #{net_forward.1} parent=1 // pred_check
      _
    $region83: #{net_forward.1} parent=1 // pred_check_branch
      %862 = sbr.rel (0) target = $region85
    $region84: #{net_forward.1} parent=1 // pred_region
      %863 = dma.done [#allocation3], 128
    $region85: #{net_forward.1} parent=1 // pred_fallthru
      _
    // Predicated region
    $region86: #{net_forward.1} parent=1 // pred_check
      _
    $region87: #{net_forward.1} parent=1 // pred_check_branch
      %865 = sbr.rel (0) target = $region89
    $region88: #{net_forward.1} parent=1 // pred_region
      %866 = dma.done [#allocation5], 128
    $region89: #{net_forward.1} parent=1 // pred_fallthru
      _
    %867 = vsyncpa [#allocation3], 1
    %868 = vsyncpa [#allocation5], 1

</llo_original>
